<compile_context>
chip_gen: v6e
topology: v6e:2x2x1
jax: 0.10.0
libtpu: 0.0.40
codegen_flags: <defaults>
</compile_context>

<pallas_src>
import jax
import jax.numpy as jnp
from jax.experimental import pallas as pl
from jax.experimental.pallas import tpu as pltpu

MARGIN = 0.001
IGNORE_INDEX = -100
MAX_MARGIN_LOSS = 1.0
EPS = 1e-8


def _ranking_ce_partial_kernel(logits_ref, targets_ref, out_ref):
    """One (b_tile, C, t_tile) block -> partial (ce_sum, n_valid, margin_sum)."""
    x = logits_ref[...].astype(jnp.float32)             # single f32 cast, reused
    t = targets_ref[...]                                 # (b, t) int32
    _, C, tt = x.shape

    valid = t != IGNORE_INDEX                            # (b, t) bool
    validf = valid.astype(jnp.float32)
    # TODO(synk): PyTorch's gather would raise on index == -100; ignored
    # targets are clamped to class 0 here (they are masked out of the CE).
    t_safe = jnp.where(valid, t, 0)

    # Class iota built once at (1, C, t) and broadcast against (b, 1, t):
    # avoids materializing a full (b, C, t) iota per block.
    cls = jax.lax.broadcasted_iota(jnp.int32, (1, C, tt), 1)
    onehot = cls == t_safe[:, None, :]                    # (b, C, t) bool

    # Single pass of class-axis reductions; everything downstream is (b, t).
    # TODO(synk): vocab-scale C needs an extra class-axis grid dim with online
    # max/sum-exp (flash-softmax) accumulation, and the two plain sums
    # (sum_x, sum_exp) should then move to the idle MXU via a ones(C)
    # contraction; negligible at small C, so not done here.
    x_t = jnp.sum(jnp.where(onehot, x, 0.0), axis=1)      # gathered logit
    m = jnp.max(x, axis=1)                                # row max
    sum_exp = jnp.sum(jnp.exp(x - m[:, None, :]), axis=1)
    sum_x = jnp.sum(x, axis=1)

    # ---- cross entropy partials (no full log-softmax materialized) ----
    logp_t = x_t - m - jnp.log(sum_exp)                   # gathered log-prob
    ce_sum = jnp.sum(jnp.sum(jnp.where(valid, -logp_t, 0.0),
                             axis=-1, keepdims=True))
    n_valid = jnp.sum(jnp.sum(validf, axis=-1, keepdims=True))

    # ---- ranking / margin partials (no masked_logits materialized) ----
    # masked = x*mask + eps  =>  gather = x_t*validf + eps,
    # sum_c(masked) = validf*sum_x + C*eps, mask.sum(c) = C*validf.
    correct = x_t * validf + EPS
    num = validf * sum_x + jnp.float32(C) * EPS
    den = validf * jnp.float32(C) + EPS
    mean_l = num * pl.reciprocal(den, approx=True)        # EUP slot, ~free
    raw = MARGIN - (correct - mean_l)
    absr = jnp.abs(raw)
    sl1 = jnp.where(absr < 1.0, 0.5 * raw * raw, absr - 0.5)
    margin_sum = jnp.sum(jnp.sum(sl1, axis=-1, keepdims=True))

    # Lane-dense per-block partials: lanes 0/1/2 of sublane 0 carry the sums.
    sub = jax.lax.broadcasted_iota(jnp.int32, (8, 128), 0)
    lane = jax.lax.broadcasted_iota(jnp.int32, (8, 128), 1)
    row0 = sub == 0
    tile = jnp.where(row0 & (lane == 0), ce_sum, 0.0)
    tile = tile + jnp.where(row0 & (lane == 1), n_valid, 0.0)
    tile = tile + jnp.where(row0 & (lane == 2), margin_sum, 0.0)
    out_ref[...] = tile[None, None]


def _vmem_budget():
    """Per-block footprint budget and vmem_limit_bytes, derived from the device."""
    try:
        cap = int(pltpu.get_tpu_info().vmem_capacity_bytes)
    except Exception:
        cap = 64 * 1024 * 1024           # conservative fallback: v7x per-TC VMEM
    # ~42 MiB footprint budget on v7x (64 MiB VMEM), 80 MiB on v5e/v6e (128 MiB);
    # leaves headroom for outputs and compiler-internal scratch.
    budget = min(int(cap * 0.65), 80 * 1024 * 1024)
    vmem_limit = min(int(cap * 0.90), 112 * 1024 * 1024)
    return budget, vmem_limit


def _choose_tiles(B, C, T, itemsize, budget):
    """Largest (b_tile, t_tile) whose VMEM footprint fits `budget`.

    Preference order: full-T rows (contiguous HBM DMA bursts) with the batch
    split first (grid_b >= 2 keeps both v7x TensorCores busy); T is split
    into lane-dense multiples of 128 only when C*T forces it.
    """
    def footprint(b, t):
        elems = b * C * t
        # 2x double-buffered input block + ~4 live f32 (b,C,t) temporaries
        # (cast x, exp(x-m), onehot, select result) + double-buffered targets.
        return elems * (2 * itemsize + 4 * 4) + 2 * b * t * 4

    b_cands = [b for b in (64, 32, 16, 8) if B % b == 0 and B // b >= 2]
    if not b_cands:                       # cannot keep grid_b >= 2
        b_cands = [b for b in (64, 32, 16, 8) if B % b == 0]
    if not b_cands:                       # small / irregular batch: full B
        b_cands = [B]

    t_cands = [T] + [t for t in (16384, 8192, 4096, 2048, 1024, 512, 256, 128)
                     if t < T and T % t == 0]

    for t in t_cands:                     # full-T rows first
        for b in b_cands:                 # then the largest batch slice
            if footprint(b, t) <= budget:
                return b, t
    # TODO(synk): vocab-scale C can exceed the budget even at the smallest
    # tile; needs the class-axis grid dim noted in the kernel TODO.
    return b_cands[-1], t_cands[-1]


def _ranking_ce_partials(logits, targets):
    B, C, T = logits.shape
    itemsize = jnp.dtype(logits.dtype).itemsize
    budget, vmem_limit = _vmem_budget()
    b_tile, t_tile = _choose_tiles(B, C, T, itemsize, budget)
    grid_b = B // b_tile
    grid_t = T // t_tile

    cost = pl.CostEstimate(
        flops=int(10 * B * C * T),
        transcendentals=int(B * C * T + 2 * B * T),
        bytes_accessed=int(B * C * T * itemsize + B * T * 4
                           + grid_b * grid_t * 8 * 128 * 4),
    )

    return pl.pallas_call(
        _ranking_ce_partial_kernel,
        out_shape=jax.ShapeDtypeStruct((grid_b, grid_t, 8, 128), jnp.float32),
        grid=(grid_b, grid_t),
        in_specs=[
            # TODO(synk): if v5e profiling still shows exposed strided-DMA
            # latency when t_tile < T, add pipeline_mode=pl.Buffered(3) here
            # (skip on v7x, where VMEM is the scarcer resource).
            pl.BlockSpec((b_tile, C, t_tile), lambda i, j: (i, 0, j)),
            pl.BlockSpec((b_tile, t_tile), lambda i, j: (i, j)),
        ],
        out_specs=pl.BlockSpec((1, 1, 8, 128), lambda i, j: (i, j, 0, 0)),
        compiler_params=pltpu.CompilerParams(
            dimension_semantics=("parallel", "parallel"),
            vmem_limit_bytes=vmem_limit),
        cost_estimate=cost,
    )(logits, targets.astype(jnp.int32))


@jax.jit
def ranking_cross_entropy_loss(logits, targets):
    """logits: (B, C, T) float (any dtype), targets: (B, T) int. Scalar loss."""
    B, C, T = logits.shape
    partials = _ranking_ce_partials(logits, targets)
    totals = jnp.sum(partials, axis=(0, 1, 2))            # (128,)
    ce_loss = totals[0] / totals[1]
    margin_loss = jnp.clip(totals[2] / jnp.float32(B * T), 0.0, MAX_MARGIN_LOSS)
    return ce_loss + margin_loss


def _reference(logits, targets):
    """Pure-JAX restatement of the PyTorch forward, for correctness checks."""
    B, C, T = logits.shape
    x2 = jnp.transpose(logits, (0, 2, 1)).reshape(-1, C)
    tflat = targets.reshape(-1)
    valid = tflat != IGNORE_INDEX
    logp = jax.nn.log_softmax(x2, axis=-1)
    picked = jnp.take_along_axis(
        logp, jnp.where(valid, tflat, 0)[:, None], axis=1)[:, 0]
    ce = jnp.sum(jnp.where(valid, -picked, 0.0)) / jnp.sum(valid)

    mask = jnp.broadcast_to(
        (targets != IGNORE_INDEX)[:, None, :], logits.shape).astype(jnp.float32)
    masked = logits * mask + EPS
    t_safe = jnp.where(targets != IGNORE_INDEX, targets, 0)
    correct = jnp.take_along_axis(masked, t_safe[:, None, :], axis=1)[:, 0, :]
    mean_l = masked.sum(axis=1) / (mask.sum(axis=1) + EPS)
    raw = MARGIN - (correct - mean_l)
    absr = jnp.abs(raw)
    sl1 = jnp.where(absr < 1.0, 0.5 * raw * raw, absr - 0.5)
    margin = jnp.clip(jnp.mean(sl1), 0.0, MAX_MARGIN_LOSS)
    return ce + margin


if __name__ == "__main__":
    key = jax.random.PRNGKey(0)
    k1, k2, k3, k4 = jax.random.split(key, 4)

    # Case 1: single-block path (small shapes, f32, all targets valid).
    B, C, T = 2, 8, 16
    logits1 = jax.random.normal(k1, (B, C, T), dtype=jnp.float32)
    targets1 = jax.random.randint(k2, (B, T), 0, C, dtype=jnp.int32)
    loss1 = jax.block_until_ready(ranking_cross_entropy_loss(logits1, targets1))
    ref1 = jax.block_until_ready(_reference(logits1, targets1))
    assert jnp.isfinite(loss1), "case 1: loss not finite"
    assert jnp.allclose(loss1, ref1, rtol=1e-3, atol=1e-3), (loss1, ref1)

    # Case 2: multi-block path (batch split so grid_b >= 2), bf16 logits with
    # no wrapper upcast, and some ignore_index positions.
    B, C, T = 16, 8, 1024
    logits2 = jax.random.normal(k3, (B, C, T),
                                dtype=jnp.float32).astype(jnp.bfloat16)
    targets2 = jax.random.randint(k4, (B, T), 0, C, dtype=jnp.int32)
    targets2 = targets2.at[:, ::7].set(IGNORE_INDEX)
    loss2 = jax.block_until_ready(ranking_cross_entropy_loss(logits2, targets2))
    ref2 = jax.block_until_ready(
        _reference(logits2.astype(jnp.float32), targets2))
    assert jnp.isfinite(loss2), "case 2: loss not finite"
    assert jnp.allclose(loss2, ref2, rtol=1e-3, atol=1e-3), (loss2, ref2)

    print("KERNEL_OK")
</pallas_src>

<mosaic_0001>
module attributes {stable_mosaic.version = 11 : i64} {
  func.func @_ranking_ce_partial_kernel(%arg0: i32, %arg1: i32, %arg2: memref<2x8x16xf32, #tpu.memory_space<vmem>>, %arg3: memref<2x16xi32, #tpu.memory_space<vmem>>, %arg4: memref<1x1x8x128xf32, #tpu.memory_space<vmem>>) attributes {dimension_semantics = [#tpu.dimension_semantics<parallel>, #tpu.dimension_semantics<parallel>], iteration_bounds = array<i64: 1, 1>, scalar_prefetch = 0 : i64, scratch_operands = 0 : i64, tpu.core_type = #tpu.core_type<tc>, window_params = [{transform_indices = @transform_0, window_bounds = array<i64: 2, 8, 16>}, {transform_indices = @transform_1, window_bounds = array<i64: 2, 16>}, {transform_indices = @transform_2, window_bounds = array<i64: 1, 1, 8, 128>}]} {
    %c0 = arith.constant 0 : index
    %c0_0 = arith.constant 0 : index
    %c0_1 = arith.constant 0 : index
    %0 = vector.load %arg2[%c0, %c0_0, %c0_1] : memref<2x8x16xf32, #tpu.memory_space<vmem>>, vector<2x8x16xf32>
    %c0_2 = arith.constant 0 : index
    %c0_3 = arith.constant 0 : index
    %1 = vector.load %arg3[%c0_2, %c0_3] : memref<2x16xi32, #tpu.memory_space<vmem>>, vector<2x16xi32>
    %c-100_i32 = arith.constant -100 : i32
    %2 = vector.broadcast %c-100_i32 : i32 to vector<2x16xi32>
    %3 = arith.cmpi ne, %1, %2 : vector<2x16xi32>
    %4 = arith.extui %3 : vector<2x16xi1> to vector<2x16xi32>
    %5 = arith.sitofp %4 : vector<2x16xi32> to vector<2x16xf32>
    %c0_i32 = arith.constant 0 : i32
    %6 = vector.broadcast %c0_i32 : i32 to vector<2x16xi32>
    %7 = arith.select %3, %1, %6 : vector<2x16xi1>, vector<2x16xi32>
    %8 = tpu.iota {dimensions = array<i32: 1>} : vector<1x8x16xi32>
    %9 = vector.shape_cast %7 : vector<2x16xi32> to vector<2x1x16xi32>
    %10 = vector.broadcast %8 : vector<1x8x16xi32> to vector<2x8x16xi32>
    %11 = vector.broadcast %9 : vector<2x1x16xi32> to vector<2x8x16xi32>
    %12 = arith.cmpi eq, %10, %11 : vector<2x8x16xi32>
    %cst = arith.constant 0.000000e+00 : f32
    %13 = vector.broadcast %cst : f32 to vector<2x8x16xf32>
    %14 = arith.select %12, %0, %13 : vector<2x8x16xi1>, vector<2x8x16xf32>
    %cst_4 = arith.constant dense<0.000000e+00> : vector<2x16xf32>
    %15 = vector.multi_reduction <add>, %14, %cst_4 [1] : vector<2x8x16xf32> to vector<2x16xf32>
    %cst_5 = arith.constant dense<0xFF800000> : vector<2x16xf32>
    %16 = vector.multi_reduction <maximumf>, %0, %cst_5 [1] : vector<2x8x16xf32> to vector<2x16xf32>
    %17 = vector.shape_cast %16 : vector<2x16xf32> to vector<2x1x16xf32>
    %18 = vector.broadcast %17 : vector<2x1x16xf32> to vector<2x8x16xf32>
    %19 = arith.subf %0, %18 : vector<2x8x16xf32>
    %20 = math.exp %19 : vector<2x8x16xf32>
    %cst_6 = arith.constant dense<0.000000e+00> : vector<2x16xf32>
    %21 = vector.multi_reduction <add>, %20, %cst_6 [1] : vector<2x8x16xf32> to vector<2x16xf32>
    %cst_7 = arith.constant dense<0.000000e+00> : vector<2x16xf32>
    %22 = vector.multi_reduction <add>, %0, %cst_7 [1] : vector<2x8x16xf32> to vector<2x16xf32>
    %23 = arith.subf %15, %16 : vector<2x16xf32>
    %24 = math.log %21 : vector<2x16xf32>
    %25 = arith.subf %23, %24 : vector<2x16xf32>
    %cst_8 = arith.constant 0.000000e+00 : f32
    %26 = vector.broadcast %cst_8 : f32 to vector<2x16xf32>
    %27 = arith.subf %26, %25 : vector<2x16xf32>
    %cst_9 = arith.constant 0.000000e+00 : f32
    %28 = vector.broadcast %cst_9 : f32 to vector<2x16xf32>
    %29 = arith.select %3, %27, %28 : vector<2x16xi1>, vector<2x16xf32>
    %cst_10 = arith.constant dense<0.000000e+00> : vector<2xf32>
    %30 = vector.multi_reduction <add>, %29, %cst_10 [1] : vector<2x16xf32> to vector<2xf32>
    %31 = vector.shape_cast %30 : vector<2xf32> to vector<2x1xf32>
    %32 = vector.shape_cast %31 : vector<2x1xf32> to vector<1x2x1xf32>
    %cst_11 = arith.constant dense<0.000000e+00> : vector<1xf32>
    %33 = vector.multi_reduction <add>, %32, %cst_11 [1, 2] : vector<1x2x1xf32> to vector<1xf32>
    %34 = vector.shape_cast %33 : vector<1xf32> to vector<1x1x1xf32>
    %35 = vector.extract %34[0, 0, 0] : f32 from vector<1x1x1xf32>
    %cst_12 = arith.constant dense<0.000000e+00> : vector<2xf32>
    %36 = vector.multi_reduction <add>, %5, %cst_12 [1] : vector<2x16xf32> to vector<2xf32>
    %37 = vector.shape_cast %36 : vector<2xf32> to vector<2x1xf32>
    %38 = vector.shape_cast %37 : vector<2x1xf32> to vector<1x2x1xf32>
    %cst_13 = arith.constant dense<0.000000e+00> : vector<1xf32>
    %39 = vector.multi_reduction <add>, %38, %cst_13 [1, 2] : vector<1x2x1xf32> to vector<1xf32>
    %40 = vector.shape_cast %39 : vector<1xf32> to vector<1x1x1xf32>
    %41 = vector.extract %40[0, 0, 0] : f32 from vector<1x1x1xf32>
    %42 = arith.mulf %15, %5 : vector<2x16xf32>
    %cst_14 = arith.constant 9.99999993E-9 : f32
    %43 = vector.broadcast %cst_14 : f32 to vector<2x16xf32>
    %44 = arith.addf %42, %43 : vector<2x16xf32>
    %45 = arith.mulf %5, %22 : vector<2x16xf32>
    %cst_15 = arith.constant 8.000000e+00 : f32
    %cst_16 = arith.constant 9.99999993E-9 : f32
    %46 = arith.mulf %cst_15, %cst_16 : f32
    %47 = vector.broadcast %46 : f32 to vector<2x16xf32>
    %48 = arith.addf %45, %47 : vector<2x16xf32>
    %cst_17 = arith.constant 8.000000e+00 : f32
    %49 = vector.broadcast %cst_17 : f32 to vector<2x16xf32>
    %50 = arith.mulf %5, %49 : vector<2x16xf32>
    %cst_18 = arith.constant 9.99999993E-9 : f32
    %51 = vector.broadcast %cst_18 : f32 to vector<2x16xf32>
    %52 = arith.addf %50, %51 : vector<2x16xf32>
    %53 = tpu.reciprocal %52 {approx = true} : vector<2x16xf32> -> vector<2x16xf32>
    %54 = arith.mulf %48, %53 : vector<2x16xf32>
    %55 = arith.subf %44, %54 : vector<2x16xf32>
    %cst_19 = arith.constant 1.000000e-03 : f32
    %56 = vector.broadcast %cst_19 : f32 to vector<2x16xf32>
    %57 = arith.subf %56, %55 : vector<2x16xf32>
    %58 = math.absf %57 : vector<2x16xf32>
    %cst_20 = arith.constant 1.000000e+00 : f32
    %59 = vector.broadcast %cst_20 : f32 to vector<2x16xf32>
    %60 = arith.cmpf olt, %58, %59 : vector<2x16xf32>
    %cst_21 = arith.constant 5.000000e-01 : f32
    %61 = vector.broadcast %cst_21 : f32 to vector<2x16xf32>
    %62 = arith.mulf %61, %57 : vector<2x16xf32>
    %63 = arith.mulf %62, %57 : vector<2x16xf32>
    %cst_22 = arith.constant 5.000000e-01 : f32
    %64 = vector.broadcast %cst_22 : f32 to vector<2x16xf32>
    %65 = arith.subf %58, %64 : vector<2x16xf32>
    %66 = arith.select %60, %63, %65 : vector<2x16xi1>, vector<2x16xf32>
    %cst_23 = arith.constant dense<0.000000e+00> : vector<2xf32>
    %67 = vector.multi_reduction <add>, %66, %cst_23 [1] : vector<2x16xf32> to vector<2xf32>
    %68 = vector.shape_cast %67 : vector<2xf32> to vector<2x1xf32>
    %69 = vector.shape_cast %68 : vector<2x1xf32> to vector<1x2x1xf32>
    %cst_24 = arith.constant dense<0.000000e+00> : vector<1xf32>
    %70 = vector.multi_reduction <add>, %69, %cst_24 [1, 2] : vector<1x2x1xf32> to vector<1xf32>
    %71 = vector.shape_cast %70 : vector<1xf32> to vector<1x1x1xf32>
    %72 = vector.extract %71[0, 0, 0] : f32 from vector<1x1x1xf32>
    %73 = tpu.iota {dimensions = array<i32: 0>} : vector<8x128xi32>
    %74 = tpu.iota {dimensions = array<i32: 1>} : vector<8x128xi32>
    %c0_i32_25 = arith.constant 0 : i32
    %75 = vector.broadcast %c0_i32_25 : i32 to vector<8x128xi32>
    %76 = arith.cmpi eq, %73, %75 : vector<8x128xi32>
    %c0_i32_26 = arith.constant 0 : i32
    %77 = vector.broadcast %c0_i32_26 : i32 to vector<8x128xi32>
    %78 = arith.cmpi eq, %74, %77 : vector<8x128xi32>
    %79 = arith.andi %76, %78 : vector<8x128xi1>
    %cst_27 = arith.constant 0.000000e+00 : f32
    %80 = vector.broadcast %35 : f32 to vector<8x128xf32>
    %81 = vector.broadcast %cst_27 : f32 to vector<8x128xf32>
    %82 = arith.select %79, %80, %81 : vector<8x128xi1>, vector<8x128xf32>
    %c1_i32 = arith.constant 1 : i32
    %83 = vector.broadcast %c1_i32 : i32 to vector<8x128xi32>
    %84 = arith.cmpi eq, %74, %83 : vector<8x128xi32>
    %85 = arith.andi %76, %84 : vector<8x128xi1>
    %cst_28 = arith.constant 0.000000e+00 : f32
    %86 = vector.broadcast %41 : f32 to vector<8x128xf32>
    %87 = vector.broadcast %cst_28 : f32 to vector<8x128xf32>
    %88 = arith.select %85, %86, %87 : vector<8x128xi1>, vector<8x128xf32>
    %89 = arith.addf %82, %88 : vector<8x128xf32>
    %c2_i32 = arith.constant 2 : i32
    %90 = vector.broadcast %c2_i32 : i32 to vector<8x128xi32>
    %91 = arith.cmpi eq, %74, %90 : vector<8x128xi32>
    %92 = arith.andi %76, %91 : vector<8x128xi1>
    %cst_29 = arith.constant 0.000000e+00 : f32
    %93 = vector.broadcast %72 : f32 to vector<8x128xf32>
    %94 = vector.broadcast %cst_29 : f32 to vector<8x128xf32>
    %95 = arith.select %92, %93, %94 : vector<8x128xi1>, vector<8x128xf32>
    %96 = arith.addf %89, %95 : vector<8x128xf32>
    %97 = vector.shape_cast %96 : vector<8x128xf32> to vector<1x1x8x128xf32>
    %c0_30 = arith.constant 0 : index
    %c0_31 = arith.constant 0 : index
    %c0_32 = arith.constant 0 : index
    %c0_33 = arith.constant 0 : index
    %98 = vector.load %arg4[%c0_30, %c0_31, %c0_32, %c0_33] : memref<1x1x8x128xf32, #tpu.memory_space<vmem>>, vector<1x1x8x128xf32>
    tpu.vector_store %arg4[%c0_30, %c0_31, %c0_32, %c0_33], %97 {strides = array<i32>} : memref<1x1x8x128xf32, #tpu.memory_space<vmem>>, vector<1x1x8x128xf32>,
    return
  }
  func.func @transform_0(%arg0: i32, %arg1: i32) -> (i32, i32, i32) {
    %c0_i32 = arith.constant 0 : i32
    %c0_i32_0 = arith.constant 0 : i32
    return %arg0, %c0_i32, %arg1 : i32, i32, i32
  }
  func.func @transform_1(%arg0: i32, %arg1: i32) -> (i32, i32) {
    %c0_i32 = arith.constant 0 : i32
    return %arg0, %arg1 : i32, i32
  }
  func.func @transform_2(%arg0: i32, %arg1: i32) -> (i32, i32, i32, i32) {
    %c0_i32 = arith.constant 0 : i32
    %c0_i32_0 = arith.constant 0 : i32
    %c0_i32_1 = arith.constant 0 : i32
    return %arg0, %arg1, %c0_i32, %c0_i32_0 : i32, i32, i32, i32
  }
}

</mosaic_0001>

<llo_original>
// kernel: ranking_cross_entropy_loss.1
$region0: #{ranking_cross_entropy_loss.1}
  #allocation0 [shape = 'u32[]', space=smem, size = 0x4, offset = 0x4, fixed_abs, tag = 'smem constant byte address 0x4 - core index']
  #allocation1 [shape = 'u32[144,128]{1,0:T(1,128)}', space=vmem, size = 0x12000, scoped, tag = 'internal scratch']
  %s0 = inlined_call_operand.hbm [shape: f32[2,8,16], index: 0, kind: input, shape index: {}]
  %s1 = inlined_call_operand.hbm [shape: s32[2,16], index: 1, kind: input, shape index: {}]
  %s2 = inlined_call_operand.vmem [shape: f32[1,1,8,128], index: 2, kind: output, shape index: {}]
  %s3 = sld [smem:[#allocation0]]
  $region26: #{ranking_cross_entropy_loss.1} parent=0
    _
  %s5 = ssub.s32 1, %s3
  %s6 = scalar_select 0, %s5, %s3
  $region1: #{ranking_cross_entropy_loss.1} parent=0
    #allocation2 [shape = 'u8[8192]{0}', space=vmem, size = 0x2000, scoped, tag = 'input window, operand 0, single buffered']
    #allocation3 [shape = 's32[1]{0}', space=sflag, size = 0x4, scoped, tag = 'scoped memory for ranking_cross_entropy_loss.1']
    #allocation4 [shape = 'u8[1024]{0}', space=vmem, size = 0x400, scoped, tag = 'input window, operand 1, single buffered']
    #allocation5 [shape = 's32[1]{0}', space=sflag, size = 0x4, scoped, tag = 'scoped memory for ranking_cross_entropy_loss.1']
    %7 = vsyncpa [#allocation3], 0
    %8 = vsyncpa [#allocation5], 0
    // Predicated region
    $region2: #{ranking_cross_entropy_loss.1} parent=1 // pred_check
      _
    $region3: #{ranking_cross_entropy_loss.1} parent=1 // pred_check_branch
      %10 = sbr.rel (0) target = $region5
    $region4: #{ranking_cross_entropy_loss.1} parent=1 // pred_region
      %s12 = ssub.s32 256, 256
      %13 = vsyncadd [#allocation3], %s12
      %s14 = sshll.u32 [#allocation2], 4
      %s15 = int_to_ptr.vmem [resolvable:$true] %s14
      %20 = dma.hbm_to_vmem [thread:$0]  %s0, 256, %s15, [#allocation3], 128, 128, 8
    $region5: #{ranking_cross_entropy_loss.1} parent=1 // pred_fallthru
      _
    // Predicated region
    $region6: #{ranking_cross_entropy_loss.1} parent=1 // pred_check
      _
    $region7: #{ranking_cross_entropy_loss.1} parent=1 // pred_check_branch
      %22 = sbr.rel (0) target = $region9
    $region8: #{ranking_cross_entropy_loss.1} parent=1 // pred_region
      %s24 = ssub.s32 32, 32
      %25 = vsyncadd [#allocation5], %s24
      %s27 = sshll.u32 [#allocation4], 4
      %s28 = int_to_ptr.vmem [resolvable:$true] %s27
      %30 = dma.hbm_to_vmem [thread:$0]  %s1, 32, %s28, [#allocation5]
    $region9: #{ranking_cross_entropy_loss.1} parent=1 // pred_fallthru
      _
    // Predicated region
    $region10: #{ranking_cross_entropy_loss.1} parent=1 // pred_check
      _
    $region11: #{ranking_cross_entropy_loss.1} parent=1 // pred_check_branch
      %32 = sbr.rel (0) target = $region13
    $region12: #{ranking_cross_entropy_loss.1} parent=1 // pred_region
      %33 = dma.done [#allocation3], 256
    $region13: #{ranking_cross_entropy_loss.1} parent=1 // pred_fallthru
      _
    // Predicated region
    $region14: #{ranking_cross_entropy_loss.1} parent=1 // pred_check
      _
    $region15: #{ranking_cross_entropy_loss.1} parent=1 // pred_check_branch
      %35 = sbr.rel (0) target = $region17
    $region16: #{ranking_cross_entropy_loss.1} parent=1 // pred_region
      %36 = dma.done [#allocation5], 32
    $region17: #{ranking_cross_entropy_loss.1} parent=1 // pred_fallthru
      _
    %v37 = vld [vmem:[#allocation2] sm:$0xff]
    %v38 = vld [vmem:[#allocation2 + $0x8] sm:$0xff]
    %v39 = vld [vmem:[#allocation4] sm:$0x3]
    %vm40 = vcmp.ne.s32.totalorder %v39, 4294967196
    %v41 = vsel %vm40, 1, 0
    %v42 = vcvt.s32.f32 %v41
    %v43 = vsel %vm40, %v39, 0
    %v44 = vlaneseq
    %v45 = vshrl.u32 %v44, 7
    %v47 = vunpack.c.l.s4 1966171168
    %v48 = vunpack.c.0.s8 %v47
    %v49 = vlaneseq
    %v50 = vshrl.u32 %v49, 7
    %v51 = vsub.s32 %v48, %v50
    %v52 = vrot.slane %v43, %v51
    %v53 = vcombine.high %v52, %v52
    %v55 = vunpack.c.l.s4 1966171168
    %v56 = vunpack.c.0.s8 %v55
    %v57 = vlaneseq
    %v58 = vshrl.u32 %v57, 7
    %v59 = vsub.s32 %v56, %v58
    %v60 = vrot.slane %v52, %v59
    %v62 = vunpack.c.l.s4 1966171168
    %v63 = vunpack.c.0.s8 %v62
    %v64 = vlaneseq
    %v65 = vshrl.u32 %v64, 7
    %v66 = vsub.s32 %v63, %v65
    %v67 = vrot.slane %v53, %v66
    %v68 = vlaneseq
    %v69 = vshrl.u32 %v68, 7
    %v70 = vsub.s32 0, %v69
    %v71 = vrot.slane %v60, %v70
    %v72 = vlaneseq
    %v73 = vshrl.u32 %v72, 7
    %v74 = vsub.s32 0, %v73
    %v75 = vrot.slane %v67, %v74
    %vm76 = vcmp.eq.s32.totalorder %v45, %v71
    %vm77 = vcmp.eq.s32.totalorder %v45, %v75
    %v78 = vsel %vm76, %v37, 0.0
    %v79 = vsel %vm77, %v38, 0.0
    %vm80 = vcmask 130048
    %v81 = vsel %vm80, %v78, 0.0
    %v82 = vrot.slane %v81, 4
    %v83 = vadd.f32 %v81, %v82
    %v84 = vrot.slane %v83, 2
    %v85 = vadd.f32 %v83, %v84
    %v86 = vrot.slane %v85, 1
    %v87 = vadd.f32 %v85, %v86
    %v88 = vsel %vm80, %v79, 0.0
    %v89 = vrot.slane %v88, 4
    %v90 = vadd.f32 %v88, %v89
    %v91 = vrot.slane %v90, 2
    %v92 = vadd.f32 %v90, %v91
    %v93 = vrot.slane %v92, 1
    %v94 = vadd.f32 %v92, %v93
    %v95 = vsel %vm80, %v37, -inf
    %v96 = vrot.slane %v95, 4
    %v97 = vmax.f32 %v95, %v96
    %v98 = vrot.slane %v97, 2
    %v99 = vmax.f32 %v97, %v98
    %v100 = vrot.slane %v99, 1
    %v101 = vmax.f32 %v99, %v100
    %v102 = vsel %vm80, %v38, -inf
    %v103 = vrot.slane %v102, 4
    %v104 = vmax.f32 %v102, %v103
    %v105 = vrot.slane %v104, 2
    %v106 = vmax.f32 %v104, %v105
    %v107 = vrot.slane %v106, 1
    %v108 = vmax.f32 %v106, %v107
    %v109 = vsub.f32 %v37, %v101
    %v110 = vsub.f32 %v38, %v108
    %v111 = vmul.f32 %v109, 1.442695
    %v112 = vpow.pop %v111
    %v113 = vmul.f32 %v110, 1.442695
    %v114 = vpow.pop %v113
    %v115 = vsel %vm80, %v112, 0.0
    %v116 = vrot.slane %v115, 4
    %v117 = vadd.f32 %v115, %v116
    %v118 = vrot.slane %v117, 2
    %v119 = vadd.f32 %v117, %v118
    %v120 = vrot.slane %v119, 1
    %v121 = vadd.f32 %v119, %v120
    %v122 = vsel %vm80, %v114, 0.0
    %v123 = vrot.slane %v122, 4
    %v124 = vadd.f32 %v122, %v123
    %v125 = vrot.slane %v124, 2
    %v126 = vadd.f32 %v124, %v125
    %v127 = vrot.slane %v126, 1
    %v128 = vadd.f32 %v126, %v127
    %v129 = vsel %vm80, %v37, 0.0
    %v130 = vrot.slane %v129, 4
    %v131 = vadd.f32 %v129, %v130
    %v132 = vrot.slane %v131, 2
    %v133 = vadd.f32 %v131, %v132
    %v134 = vrot.slane %v133, 1
    %v135 = vadd.f32 %v133, %v134
    %v136 = vsel %vm80, %v38, 0.0
    %v137 = vrot.slane %v136, 4
    %v138 = vadd.f32 %v136, %v137
    %v139 = vrot.slane %v138, 2
    %v140 = vadd.f32 %v138, %v139
    %v141 = vrot.slane %v140, 1
    %v142 = vadd.f32 %v140, %v141
    %v143 = vsub.f32 %v87, %v101
    %v144 = vsub.f32 %v94, %v108
    %v145 = vlog2.pop %v121
    %v146 = vmul.f32 %v145, 0.6931472
    %v147 = vlog2.pop %v128
    %v148 = vmul.f32 %v147, 0.6931472
    %v149 = vsub.f32 %v143, %v146
    %v150 = vsub.f32 %v144, %v148
    %v151 = vsub.f32 0.0, %v149
    %v152 = vsub.f32 0.0, %v150
    %vm155 = vcmask 1041409
    %v156 = vsel %vm155, %v152, %v151
    %v158 = vsel %vm40, %v156, 0.0
    %vm159 = vcmask 123904
    %v160 = vsel %vm159, %v158, 0.0
    %161 = vadd.xlane.f32.xlu0 %v160
    %v162 = vpop.xlane.xlu0 %161
    %vm163 = vcmask 1024
    %v164 = vsel %vm163, %v162, 0.0
    %165 = vadd.xlane.f32.xlu0 %v164
    %v166 = vpop.xlane.xlu0 %165
    %v167 = vrot.slane %v166, 4
    %v168 = vadd.f32 %v166, %v167
    %v169 = vrot.slane %v168, 2
    %v170 = vadd.f32 %v168, %v169
    %v171 = vrot.slane %v170, 1
    %v172 = vadd.f32 %v170, %v171
    %s173 = vtos %v172
    %v174 = vsel %vm159, %v42, 0.0
    %175 = vadd.xlane.f32.xlu0 %v174
    %v176 = vpop.xlane.xlu0 %175
    %v177 = vsel %vm163, %v176, 0.0
    %178 = vadd.xlane.f32.xlu0 %v177
    %v179 = vpop.xlane.xlu0 %178
    %v180 = vrot.slane %v179, 4
    %v181 = vadd.f32 %v179, %v180
    %v182 = vrot.slane %v181, 2
    %v183 = vadd.f32 %v181, %v182
    %v184 = vrot.slane %v183, 1
    %v185 = vadd.f32 %v183, %v184
    %s186 = vtos %v185
    %v188 = vrot.slane %v42, 1
    %v191 = vmul.f32 %v87, %v42
    %v192 = vmul.f32 %v94, %v188
    %v193 = vadd.f32 %v191, 1e-08
    %v194 = vadd.f32 %v192, 1e-08
    %v197 = vsel %vm155, %v142, %v135
    %v199 = vmul.f32 %v42, %v197
    %v200 = vadd.f32 %v199, 8e-08
    %v201 = vmul.f32 %v42, 8.0
    %v202 = vadd.f32 %v201, 1e-08
    %v203 = vrcp.pop %v202
    %v204 = vmul.f32 %v200, %v203
    %v206 = vrot.slane %v204, 1
    %v209 = vsub.f32 %v193, %v204
    %v210 = vsub.f32 %v194, %v206
    %v211 = vsub.f32 0.001, %v209
    %v212 = vsub.f32 0.001, %v210
    %v213 = vand.u32 2147483647, %v211
    %v214 = vand.u32 2147483647, %v212
    %vm215 = vcmp.lt.f32.partialorder %v213, 1.0
    %vm216 = vcmp.lt.f32.partialorder %v214, 1.0
    %v217 = vmul.f32 %v211, 0.5
    %v218 = vmul.f32 %v212, 0.5
    %v219 = vmul.f32 %v217, %v211
    %v220 = vmul.f32 %v218, %v212
    %v221 = vsub.f32 %v213, 0.5
    %v222 = vsub.f32 %v214, 0.5
    %v223 = vsel %vm215, %v219, %v221
    %v224 = vsel %vm216, %v220, %v222
    %v227 = vrot.slane %v224, 7
    %v228 = vsel %vm155, %v227, %v223
    %v230 = vsel %vm159, %v228, 0.0
    %231 = vadd.xlane.f32.xlu0 %v230
    %v232 = vpop.xlane.xlu0 %231
    %v233 = vsel %vm163, %v232, 0.0
    %234 = vadd.xlane.f32.xlu0 %v233
    %v235 = vpop.xlane.xlu0 %234
    %v236 = vrot.slane %v235, 4
    %v237 = vadd.f32 %v235, %v236
    %v238 = vrot.slane %v237, 2
    %v239 = vadd.f32 %v237, %v238
    %v240 = vrot.slane %v239, 1
    %v241 = vadd.f32 %v239, %v240
    %s242 = vtos %v241
    %v243 = vlaneseq
    %v244 = vand.u32 %v243, 127
    %vm245 = vcmp.eq.s32.totalorder %v45, 0
    %vm246 = vcmp.eq.s32.totalorder %v244, 0
    %vm247 = vmand %vm245, %vm246
    %v248 = vstv %s173
    %v249 = vsel %vm247, %v248, 0.0
    %vm250 = vcmp.eq.s32.totalorder %v244, 1
    %vm251 = vmand %vm245, %vm250
    %v252 = vstv %s186
    %v253 = vsel %vm251, %v252, 0.0
    %v254 = vadd.f32 %v249, %v253
    %vm255 = vcmp.eq.s32.totalorder %v244, 2
    %vm256 = vmand %vm245, %vm255
    %v257 = vstv %s242
    %v258 = vsel %vm256, %v257, 0.0
    %v259 = vadd.f32 %v254, %v258
    %260 = vst [vmem:[%s2] sm:$0xff] %v259
    // Predicated region
    $region18: #{ranking_cross_entropy_loss.1} parent=1 // pred_check
      _
    $region19: #{ranking_cross_entropy_loss.1} parent=1 // pred_check_branch
      %262 = sbr.rel (0) target = $region21
    $region20: #{ranking_cross_entropy_loss.1} parent=1 // pred_region
      _
    $region21: #{ranking_cross_entropy_loss.1} parent=1 // pred_fallthru
      _
    // Predicated region
    $region22: #{ranking_cross_entropy_loss.1} parent=1 // pred_check
      _
    $region23: #{ranking_cross_entropy_loss.1} parent=1 // pred_check_branch
      %264 = sbr.rel (0) target = $region25
    $region24: #{ranking_cross_entropy_loss.1} parent=1 // pred_region
      _
    $region25: #{ranking_cross_entropy_loss.1} parent=1 // pred_fallthru
      _
    %265 = vsyncpa [#allocation3], 1
    %266 = vsyncpa [#allocation5], 1

</llo_original>
